<compile_context>
chip_gen: v7x
topology: tpu7x:2x2x1
jax: 0.10.0
libtpu: 0.0.40
codegen_flags: <defaults>
</compile_context>

<pallas_src>
import functools

import jax
import jax.numpy as jnp
from jax.experimental import pallas as pl
from jax.experimental.pallas import tpu as pltpu


def _round_up(x, m):
    return ((x + m - 1) // m) * m


def _pick_tile_b(batch, input_dim, enc_width, budget_bytes=24 * 1024 * 1024):
    # Larger tiles amortize the ~0.35 us per-grid-step overhead; bound the tile
    # by the VMEM budget of the streamed (double-buffered) x and enc_out tiles.
    for t in (512, 256, 128, 64, 32, 16, 8):
        if batch % t == 0 and 2 * 4 * t * (input_dim + enc_width) <= budget_bytes:
            return t
    return batch  # tiny / odd batch: single whole-batch tile


def _make_encoder_kernel(*, two_kl_pad, n_components):
    def kernel(x_ref, w0, b0, w1, b1, wh, bh, enc_out_ref):
        def dense(a, w_ref, b_ref):
            # activations follow the weight dtype (optionally bf16), f32 accumulate
            return jnp.dot(a.astype(w_ref.dtype), w_ref[...],
                           preferred_element_type=jnp.float32) + b_ref[...]

        h0 = jnp.maximum(dense(x_ref[...], w0, b0), 0.0)
        # Dropout(p=0.05): identity in eval mode.
        h1 = jnp.maximum(dense(h0, w1, b1), 0.0)
        # Dropout(p=0.05): identity in eval mode.

        heads = dense(h1, wh, bh)           # (tile_b, 2P + Kp), one MXU push

        # [mu | logvar] slab is already in its final lane-aligned layout:
        # offset 0, width 2P (multiple of 128) -> unmasked stores.
        enc_out_ref[:, :two_kl_pad] = heads[:, :two_kl_pad]

        # pi head: masked softmax over the first n_components lanes of the
        # 128-padded block; padded lanes come out exactly 0.
        logits = heads[:, two_kl_pad:]
        lane = jax.lax.broadcasted_iota(jnp.int32, logits.shape, 1)
        valid = lane < n_components
        logits = jnp.where(valid, logits, -1e30)
        logits = logits - jnp.max(logits, axis=-1, keepdims=True)
        e = jnp.where(valid, jnp.exp(logits), 0.0)
        # NOTE: pl.reciprocal(approx=True) would move this divide to the EUP,
        # but perturbs sum(pis)==1 beyond 1e-5; keep the exact divide.
        pis = e / jnp.sum(e, axis=-1, keepdims=True)
        enc_out_ref[:, two_kl_pad:] = pis

    return kernel


def _decoder_kernel(selmu_ref, sellv_ref, eps_ref,
                    w3, b3, w4, b4, w5, b5,
                    recon_ref, z_ref):
    def dense(a, w_ref, b_ref):
        return jnp.dot(a.astype(w_ref.dtype), w_ref[...],
                       preferred_element_type=jnp.float32) + b_ref[...]

    # reparameterize_with_labels (per-label component-mean gather done in wrapper)
    z = selmu_ref[...] + eps_ref[...] * jnp.exp(0.5 * sellv_ref[...])
    h3 = jnp.maximum(dense(z, w3, b3), 0.0)
    # Dropout(p=0.05): identity in eval mode.
    h4 = jnp.maximum(dense(h3, w4, b4), 0.0)
    # Dropout(p=0.05): identity in eval mode.
    recon_ref[...] = jnp.maximum(dense(h4, w5, b5), 0.0)
    z_ref[...] = z


# --------------------------------------------------------------------------
# Parameter initialization (deterministic; PyTorch-Linear-style uniform init)
# --------------------------------------------------------------------------
def _init_linear(key, fan_in, fan_out):
    kw, kb = jax.random.split(key)
    bound = 1.0 / (fan_in ** 0.5)
    w = jax.random.uniform(kw, (fan_in, fan_out), jnp.float32, -bound, bound)
    b = jax.random.uniform(kb, (1, fan_out), jnp.float32, -bound, bound)
    return w, b


def init_params(key, input_dim, hidden_dim, latent_dim, n_components):
    keys = jax.random.split(key, 10)
    h2 = hidden_dim // 2
    p = {}
    p["w0"], p["b0"] = _init_linear(keys[0], input_dim, h2)
    p["w1"], p["b1"] = _init_linear(keys[1], h2, hidden_dim)
    p["w21"], p["b21"] = _init_linear(keys[2], hidden_dim, n_components * latent_dim)
    p["w22"], p["b22"] = _init_linear(keys[3], hidden_dim, n_components * latent_dim)
    p["wpi"], p["bpi"] = _init_linear(keys[4], hidden_dim, n_components)
    p["w3"], p["b3"] = _init_linear(keys[5], latent_dim, h2)
    p["w4"], p["b4"] = _init_linear(keys[6], h2, hidden_dim)
    p["w5"], p["b5"] = _init_linear(keys[7], hidden_dim, input_dim)
    # present in the module but unused by forward()
    p["prob_extra_zero"] = jax.random.uniform(keys[8], (1,), jnp.float32)
    p["over_disp"] = jax.random.uniform(keys[9], (1,), jnp.float32)
    return p


# --------------------------------------------------------------------------
# Forward wrapper: encoder pallas_call + tiny XLA glue + decoder pallas_call
# --------------------------------------------------------------------------
@functools.partial(jax.jit,
                   static_argnames=("latent_dim", "n_components", "use_bf16_matmul"))
def gmvae_forward(params, x, labels, eps, *, latent_dim, n_components,
                  use_bf16_matmul=False):
    input_dim = params["w0"].shape[0]
    h2 = params["w0"].shape[1]
    hidden_dim = params["w1"].shape[1]
    K, L = n_components, latent_dim
    KL = K * L

    x = x.reshape(-1, input_dim).astype(jnp.float32)   # x.view(-1, input_dim)
    B = x.shape[0]
    N = labels.shape[0]
    labels = labels.astype(jnp.int32).reshape(N)
    eps = eps.astype(jnp.float32)

    # ---- lane-aligned fused heads: [mu | logvar | pi], each padded to 128 ----
    P = _round_up(KL, 128)
    Kp = _round_up(K, 128)
    enc_width = 2 * P + Kp          # multiple of 128 -> lane-dense output slab

    def pad_cols(w, b, width):
        pad = width - w.shape[1]
        return jnp.pad(w, ((0, 0), (0, pad))), jnp.pad(b, ((0, 0), (0, pad)))

    w21p, b21p = pad_cols(params["w21"], params["b21"], P)
    w22p, b22p = pad_cols(params["w22"], params["b22"], P)
    wpip, bpip = pad_cols(params["wpi"], params["bpi"], Kp)
    wh = jnp.concatenate([w21p, w22p, wpip], axis=1)   # stays f32 (precision)
    bh = jnp.concatenate([b21p, b22p, bpip], axis=1)

    # Optional bf16 MXU inputs for trunk/decoder matmuls (f32 accumulation).
    # Recommended True on v6e/v7x (halves weight DMA/VMEM); heads stay f32.
    mm = jnp.bfloat16 if use_bf16_matmul else jnp.float32
    w0 = params["w0"].astype(mm); b0 = params["b0"]
    w1 = params["w1"].astype(mm); b1 = params["b1"]
    w3 = params["w3"].astype(mm); b3 = params["b3"]
    w4 = params["w4"].astype(mm); b4 = params["b4"]
    w5 = params["w5"].astype(mm); b5 = params["b5"]

    tile_b = _pick_tile_b(B, input_dim, enc_width)
    num_tiles = B // tile_b

    def full(arr):
        # Grid-invariant block, resident across the grid.
        # NOTE: pipeline_mode=pl.Buffered(1) would single-buffer these and halve
        # their VMEM footprint; omitted for portability across jax versions.
        nd = arr.ndim
        return pl.BlockSpec(arr.shape, lambda i, _nd=nd: (0,) * _nd)

    def nbytes(a):
        return int(a.size) * a.dtype.itemsize

    weight_bytes = sum(nbytes(a) for a in (w0, b0, w1, b1, wh, bh))
    stream_bytes = 2 * 4 * tile_b * (input_dim + enc_width)     # double-buffered
    vmem_need = 2 * weight_bytes + stream_bytes                 # weights dbl-buffered
    vmem_limit = int(min(max(int(vmem_need * 1.25), 32 << 20), 128 << 20))

    enc_cost = pl.CostEstimate(
        flops=int(2 * B * (input_dim * h2 + h2 * hidden_dim + hidden_dim * enc_width)),
        transcendentals=int(B * K),
        bytes_accessed=int(4 * B * (input_dim + enc_width) + weight_bytes),
    )

    enc_kernel = _make_encoder_kernel(two_kl_pad=2 * P, n_components=K)

    enc_out = pl.pallas_call(
        enc_kernel,
        out_shape=jax.ShapeDtypeStruct((B, enc_width), jnp.float32),
        grid_spec=pltpu.PrefetchScalarGridSpec(
            num_scalar_prefetch=0,
            grid=(num_tiles,),
            in_specs=[
                pl.BlockSpec((tile_b, input_dim), lambda i: (i, 0)),   # x tile
                full(w0), full(b0), full(w1), full(b1), full(wh), full(bh),
            ],
            out_specs=pl.BlockSpec((tile_b, enc_width), lambda i: (i, 0)),
        ),
        compiler_params=pltpu.CompilerParams(
            # No carried state across batch tiles -> megacore-shardable on v7x.
            dimension_semantics=("parallel",),
            vmem_limit_bytes=vmem_limit,
        ),
        cost_estimate=enc_cost,
    )(x, w0, b0, w1, b1, wh, bh)

    mus_flat = enc_out[:, :KL]
    logvars_flat = enc_out[:, P:P + KL]
    pis = enc_out[:, 2 * P:2 * P + K]

    # reparameterize_with_labels: batch means + per-label component gather
    # (trivial XLA reduce/gather on data already in HBM; hoisted out of kernel).
    mean_mu = jnp.mean(mus_flat, axis=0).reshape(K, L)
    mean_lv = jnp.mean(logvars_flat, axis=0).reshape(K, L)
    sel_mu = jnp.take(mean_mu, labels, axis=0)     # (N, L)
    sel_lv = jnp.take(mean_lv, labels, axis=0)     # (N, L)

    recon, zs = pl.pallas_call(
        _decoder_kernel,
        out_shape=(jax.ShapeDtypeStruct((N, input_dim), jnp.float32),
                   jax.ShapeDtypeStruct((N, L), jnp.float32)),
        grid_spec=pltpu.PrefetchScalarGridSpec(
            num_scalar_prefetch=0,
            grid=(1,),
            in_specs=[full(sel_mu), full(sel_lv), full(eps),
                      full(w3), full(b3), full(w4), full(b4), full(w5), full(b5)],
            out_specs=(pl.BlockSpec((N, input_dim), lambda i: (0, 0)),
                       pl.BlockSpec((N, L), lambda i: (0, 0))),
        ),
        compiler_params=pltpu.CompilerParams(
            dimension_semantics=("arbitrary",),
        ),
    )(sel_mu, sel_lv, eps, w3, b3, w4, b4, w5, b5)

    mus = mus_flat.reshape(B, K, L)
    logvars = logvars_flat.reshape(B, K, L)
    return recon, mus, logvars, pis, zs


# --------------------------------------------------------------------------
# Pure-JAX reference (same forward semantics) for a correctness spot-check.
# --------------------------------------------------------------------------
def _reference_forward(params, x, labels, eps, latent_dim, n_components):
    input_dim = params["w0"].shape[0]
    K, L = n_components, latent_dim
    xv = x.reshape(-1, input_dim)
    h0 = jax.nn.relu(xv @ params["w0"] + params["b0"])
    h1 = jax.nn.relu(h0 @ params["w1"] + params["b1"])
    mu = h1 @ params["w21"] + params["b21"]
    logvar = h1 @ params["w22"] + params["b22"]
    logits = h1 @ params["wpi"] + params["bpi"]
    logits = logits - jnp.max(logits, axis=-1, keepdims=True)
    pis = jax.nn.softmax(logits, axis=-1)
    mus = mu.reshape(-1, K, L)
    logvars = logvar.reshape(-1, K, L)
    mean_mu = jnp.mean(mus, axis=0)
    mean_lv = jnp.mean(logvars, axis=0)
    sel_mu = mean_mu[labels]
    sel_lv = mean_lv[labels]
    z = sel_mu + eps * jnp.exp(0.5 * sel_lv)
    h3 = jax.nn.relu(z @ params["w3"] + params["b3"])
    h4 = jax.nn.relu(h3 @ params["w4"] + params["b4"])
    recon = jax.nn.relu(h4 @ params["w5"] + params["b5"])
    return recon, mus, logvars, pis, z


# --------------------------------------------------------------------------
if __name__ == "__main__":
    input_dim = 16
    hidden_dim = 32
    latent_dim = 8
    n_components = 4
    batch = 8
    n_labels = 4

    root = jax.random.PRNGKey(0)
    k_param, k_x, k_eps = jax.random.split(root, 3)

    params = init_params(k_param, input_dim, hidden_dim, latent_dim, n_components)
    x = jax.random.normal(k_x, (batch, input_dim), jnp.float32)
    labels = jnp.array([0, 1, 2, 3], dtype=jnp.int32)
    # TODO(synk): deterministic stand-in for torch.randn_like(std) in reparameterize
    eps = jax.random.normal(k_eps, (n_labels, latent_dim), jnp.float32)

    recon, mus, logvars, pis, zs = gmvae_forward(
        params, x, labels, eps,
        latent_dim=latent_dim, n_components=n_components)
    jax.block_until_ready((recon, mus, logvars, pis, zs))

    assert recon.shape == (n_labels, input_dim)
    assert mus.shape == (batch, n_components, latent_dim)
    assert logvars.shape == (batch, n_components, latent_dim)
    assert pis.shape == (batch, n_components)
    assert zs.shape == (n_labels, latent_dim)
    assert bool(jnp.all(jnp.isfinite(recon)))
    assert bool(jnp.allclose(jnp.sum(pis, axis=-1), 1.0, atol=1e-5))

    with jax.default_matmul_precision("highest"):
        ref = _reference_forward(params, x, labels, eps, latent_dim, n_components)
    for got, want in zip((recon, mus, logvars, pis, zs), ref):
        assert bool(jnp.allclose(got, want, atol=1e-2, rtol=1e-2))

    print("KERNEL_OK")
</pallas_src>

<mosaic_0001>
module attributes {stable_mosaic.version = 11 : i64} {
  func.func @kernel(%arg0: i32, %arg1: memref<8x16xf32, #tpu.memory_space<vmem>>, %arg2: memref<16x16xf32, #tpu.memory_space<vmem>>, %arg3: memref<1x16xf32, #tpu.memory_space<vmem>>, %arg4: memref<16x32xf32, #tpu.memory_space<vmem>>, %arg5: memref<1x32xf32, #tpu.memory_space<vmem>>, %arg6: memref<32x384xf32, #tpu.memory_space<vmem>>, %arg7: memref<1x384xf32, #tpu.memory_space<vmem>>, %arg8: memref<8x384xf32, #tpu.memory_space<vmem>>) attributes {dimension_semantics = [#tpu.dimension_semantics<parallel>], iteration_bounds = array<i64: 1>, scalar_prefetch = 0 : i64, scratch_operands = 0 : i64, tpu.core_type = #tpu.core_type<tc>, window_params = [{transform_indices = @transform_0, window_bounds = array<i64: 8, 16>}, {pipeline_mode = #tpu.pipeline_mode<synchronous>, transform_indices = @transform_1, window_bounds = array<i64: 16, 16>}, {pipeline_mode = #tpu.pipeline_mode<synchronous>, transform_indices = @transform_2, window_bounds = array<i64: 1, 16>}, {pipeline_mode = #tpu.pipeline_mode<synchronous>, transform_indices = @transform_3, window_bounds = array<i64: 16, 32>}, {pipeline_mode = #tpu.pipeline_mode<synchronous>, transform_indices = @transform_4, window_bounds = array<i64: 1, 32>}, {pipeline_mode = #tpu.pipeline_mode<synchronous>, transform_indices = @transform_5, window_bounds = array<i64: 32, 384>}, {pipeline_mode = #tpu.pipeline_mode<synchronous>, transform_indices = @transform_6, window_bounds = array<i64: 1, 384>}, {transform_indices = @transform_7, window_bounds = array<i64: 8, 384>}]} {
    %c0 = arith.constant 0 : index
    %c0_0 = arith.constant 0 : index
    %0 = vector.load %arg1[%c0, %c0_0] : memref<8x16xf32, #tpu.memory_space<vmem>>, vector<8x16xf32>
    %c0_1 = arith.constant 0 : index
    %c0_2 = arith.constant 0 : index
    %1 = vector.load %arg2[%c0_1, %c0_2] : memref<16x16xf32, #tpu.memory_space<vmem>>, vector<16x16xf32>
    %cst = arith.constant dense<0.000000e+00> : vector<8x16xf32>
    %2 = tpu.matmul %0, %1, %cst {dimension_numbers = #tpu.dot_dimension_numbers<[1], [0], [0], [1], [0, 0, 1, 1], [], []>} : vector<8x16xf32>, vector<16x16xf32>, vector<8x16xf32> -> vector<8x16xf32>
    %c0_3 = arith.constant 0 : index
    %c0_4 = arith.constant 0 : index
    %3 = vector.load %arg3[%c0_3, %c0_4] : memref<1x16xf32, #tpu.memory_space<vmem>>, vector<1x16xf32>
    %4 = vector.broadcast %3 : vector<1x16xf32> to vector<8x16xf32>
    %5 = arith.addf %2, %4 : vector<8x16xf32>
    %cst_5 = arith.constant 0.000000e+00 : f32
    %6 = vector.broadcast %cst_5 : f32 to vector<8x16xf32>
    %7 = arith.maximumf %5, %6 : vector<8x16xf32>
    %c0_6 = arith.constant 0 : index
    %c0_7 = arith.constant 0 : index
    %8 = vector.load %arg4[%c0_6, %c0_7] : memref<16x32xf32, #tpu.memory_space<vmem>>, vector<16x32xf32>
    %cst_8 = arith.constant dense<0.000000e+00> : vector<8x32xf32>
    %9 = tpu.matmul %7, %8, %cst_8 {dimension_numbers = #tpu.dot_dimension_numbers<[1], [0], [0], [1], [0, 0, 1, 1], [], []>} : vector<8x16xf32>, vector<16x32xf32>, vector<8x32xf32> -> vector<8x32xf32>
    %c0_9 = arith.constant 0 : index
    %c0_10 = arith.constant 0 : index
    %10 = vector.load %arg5[%c0_9, %c0_10] : memref<1x32xf32, #tpu.memory_space<vmem>>, vector<1x32xf32>
    %11 = vector.broadcast %10 : vector<1x32xf32> to vector<8x32xf32>
    %12 = arith.addf %9, %11 : vector<8x32xf32>
    %cst_11 = arith.constant 0.000000e+00 : f32
    %13 = vector.broadcast %cst_11 : f32 to vector<8x32xf32>
    %14 = arith.maximumf %12, %13 : vector<8x32xf32>
    %c0_12 = arith.constant 0 : index
    %c0_13 = arith.constant 0 : index
    %15 = vector.load %arg6[%c0_12, %c0_13] : memref<32x384xf32, #tpu.memory_space<vmem>>, vector<32x384xf32>
    %cst_14 = arith.constant dense<0.000000e+00> : vector<8x384xf32>
    %16 = tpu.matmul %14, %15, %cst_14 {dimension_numbers = #tpu.dot_dimension_numbers<[1], [0], [0], [1], [0, 0, 1, 1], [], []>} : vector<8x32xf32>, vector<32x384xf32>, vector<8x384xf32> -> vector<8x384xf32>
    %c0_15 = arith.constant 0 : index
    %c0_16 = arith.constant 0 : index
    %17 = vector.load %arg7[%c0_15, %c0_16] : memref<1x384xf32, #tpu.memory_space<vmem>>, vector<1x384xf32>
    %18 = vector.broadcast %17 : vector<1x384xf32> to vector<8x384xf32>
    %19 = arith.addf %16, %18 : vector<8x384xf32>
    %20 = vector.extract_strided_slice %19 {offsets = [0, 0], sizes = [8, 256], strides = [1, 1]} : vector<8x384xf32> to vector<8x256xf32>
    %c0_17 = arith.constant 0 : index
    %c0_18 = arith.constant 0 : index
    %21 = vector.load %arg8[%c0_17, %c0_18] : memref<8x384xf32, #tpu.memory_space<vmem>>, vector<8x256xf32>
    tpu.vector_store %arg8[%c0_17, %c0_18], %20 {strides = array<i32>} : memref<8x384xf32, #tpu.memory_space<vmem>>, vector<8x256xf32>,
    %22 = vector.extract_strided_slice %19 {offsets = [0, 256], sizes = [8, 128], strides = [1, 1]} : vector<8x384xf32> to vector<8x128xf32>
    %23 = tpu.iota {dimensions = array<i32: 1>} : vector<8x128xi32>
    %c4_i32 = arith.constant 4 : i32
    %24 = vector.broadcast %c4_i32 : i32 to vector<8x128xi32>
    %25 = arith.cmpi slt, %23, %24 : vector<8x128xi32>
    %cst_19 = arith.constant -1.000000e+30 : f32
    %26 = vector.broadcast %cst_19 : f32 to vector<8x128xf32>
    %27 = arith.select %25, %22, %26 : vector<8x128xi1>, vector<8x128xf32>
    %cst_20 = arith.constant dense<0xFF800000> : vector<8xf32>
    %28 = vector.multi_reduction <maximumf>, %27, %cst_20 [1] : vector<8x128xf32> to vector<8xf32>
    %29 = vector.shape_cast %28 : vector<8xf32> to vector<8x1xf32>
    %30 = vector.broadcast %29 : vector<8x1xf32> to vector<8x128xf32>
    %31 = arith.subf %27, %30 : vector<8x128xf32>
    %32 = math.exp %31 : vector<8x128xf32>
    %cst_21 = arith.constant 0.000000e+00 : f32
    %33 = vector.broadcast %cst_21 : f32 to vector<8x128xf32>
    %34 = arith.select %25, %32, %33 : vector<8x128xi1>, vector<8x128xf32>
    %cst_22 = arith.constant dense<0.000000e+00> : vector<8xf32>
    %35 = vector.multi_reduction <add>, %34, %cst_22 [1] : vector<8x128xf32> to vector<8xf32>
    %36 = vector.shape_cast %35 : vector<8xf32> to vector<8x1xf32>
    %37 = vector.broadcast %36 : vector<8x1xf32> to vector<8x128xf32>
    %38 = arith.divf %34, %37 : vector<8x128xf32>
    %c0_23 = arith.constant 0 : index
    %c256 = arith.constant 256 : index
    %39 = vector.load %arg8[%c0_23, %c256] : memref<8x384xf32, #tpu.memory_space<vmem>>, vector<8x128xf32>
    tpu.vector_store %arg8[%c0_23, %c256], %38 {strides = array<i32>} : memref<8x384xf32, #tpu.memory_space<vmem>>, vector<8x128xf32>,
    return
  }
  func.func @transform_0(%arg0: i32) -> (i32, i32) {
    %c0_i32 = arith.constant 0 : i32
    %c0_i32_0 = arith.constant 0 : i32
    return %arg0, %c0_i32 : i32, i32
  }
  func.func @transform_1(%arg0: i32) -> (i32, i32) {
    %c0_i32 = arith.constant 0 : i32
    %c0_i32_0 = arith.constant 0 : i32
    %c0_i32_1 = arith.constant 0 : i32
    return %c0_i32, %c0_i32_0 : i32, i32
  }
  func.func @transform_2(%arg0: i32) -> (i32, i32) {
    %c0_i32 = arith.constant 0 : i32
    %c0_i32_0 = arith.constant 0 : i32
    %c0_i32_1 = arith.constant 0 : i32
    return %c0_i32, %c0_i32_0 : i32, i32
  }
  func.func @transform_3(%arg0: i32) -> (i32, i32) {
    %c0_i32 = arith.constant 0 : i32
    %c0_i32_0 = arith.constant 0 : i32
    %c0_i32_1 = arith.constant 0 : i32
    return %c0_i32, %c0_i32_0 : i32, i32
  }
  func.func @transform_4(%arg0: i32) -> (i32, i32) {
    %c0_i32 = arith.constant 0 : i32
    %c0_i32_0 = arith.constant 0 : i32
    %c0_i32_1 = arith.constant 0 : i32
    return %c0_i32, %c0_i32_0 : i32, i32
  }
  func.func @transform_5(%arg0: i32) -> (i32, i32) {
    %c0_i32 = arith.constant 0 : i32
    %c0_i32_0 = arith.constant 0 : i32
    %c0_i32_1 = arith.constant 0 : i32
    return %c0_i32, %c0_i32_0 : i32, i32
  }
  func.func @transform_6(%arg0: i32) -> (i32, i32) {
    %c0_i32 = arith.constant 0 : i32
    %c0_i32_0 = arith.constant 0 : i32
    %c0_i32_1 = arith.constant 0 : i32
    return %c0_i32, %c0_i32_0 : i32, i32
  }
  func.func @transform_7(%arg0: i32) -> (i32, i32) {
    %c0_i32 = arith.constant 0 : i32
    %c0_i32_0 = arith.constant 0 : i32
    return %arg0, %c0_i32 : i32, i32
  }
}

module attributes {stable_mosaic.version = 11 : i64} {
  func.func @_decoder_kernel(%arg0: i32, %arg1: memref<4x8xf32, #tpu.memory_space<vmem>>, %arg2: memref<4x8xf32, #tpu.memory_space<vmem>>, %arg3: memref<4x8xf32, #tpu.memory_space<vmem>>, %arg4: memref<8x16xf32, #tpu.memory_space<vmem>>, %arg5: memref<1x16xf32, #tpu.memory_space<vmem>>, %arg6: memref<16x32xf32, #tpu.memory_space<vmem>>, %arg7: memref<1x32xf32, #tpu.memory_space<vmem>>, %arg8: memref<32x16xf32, #tpu.memory_space<vmem>>, %arg9: memref<1x16xf32, #tpu.memory_space<vmem>>, %arg10: memref<4x16xf32, #tpu.memory_space<vmem>>, %arg11: memref<4x8xf32, #tpu.memory_space<vmem>>) attributes {dimension_semantics = [#tpu.dimension_semantics<arbitrary>], iteration_bounds = array<i64: 1>, scalar_prefetch = 0 : i64, scratch_operands = 0 : i64, tpu.core_type = #tpu.core_type<tc>, window_params = [{pipeline_mode = #tpu.pipeline_mode<synchronous>, transform_indices = @transform_0, window_bounds = array<i64: 4, 8>}, {pipeline_mode = #tpu.pipeline_mode<synchronous>, transform_indices = @transform_1, window_bounds = array<i64: 4, 8>}, {pipeline_mode = #tpu.pipeline_mode<synchronous>, transform_indices = @transform_2, window_bounds = array<i64: 4, 8>}, {pipeline_mode = #tpu.pipeline_mode<synchronous>, transform_indices = @transform_3, window_bounds = array<i64: 8, 16>}, {pipeline_mode = #tpu.pipeline_mode<synchronous>, transform_indices = @transform_4, window_bounds = array<i64: 1, 16>}, {pipeline_mode = #tpu.pipeline_mode<synchronous>, transform_indices = @transform_5, window_bounds = array<i64: 16, 32>}, {pipeline_mode = #tpu.pipeline_mode<synchronous>, transform_indices = @transform_6, window_bounds = array<i64: 1, 32>}, {pipeline_mode = #tpu.pipeline_mode<synchronous>, transform_indices = @transform_7, window_bounds = array<i64: 32, 16>}, {pipeline_mode = #tpu.pipeline_mode<synchronous>, transform_indices = @transform_8, window_bounds = array<i64: 1, 16>}, {pipeline_mode = #tpu.pipeline_mode<synchronous>, transform_indices = @transform_9, window_bounds = array<i64: 4, 16>}, {pipeline_mode = #tpu.pipeline_mode<synchronous>, transform_indices = @transform_10, window_bounds = array<i64: 4, 8>}]} {
    %c0 = arith.constant 0 : index
    %c0_0 = arith.constant 0 : index
    %0 = vector.load %arg1[%c0, %c0_0] : memref<4x8xf32, #tpu.memory_space<vmem>>, vector<4x8xf32>
    %c0_1 = arith.constant 0 : index
    %c0_2 = arith.constant 0 : index
    %1 = vector.load %arg3[%c0_1, %c0_2] : memref<4x8xf32, #tpu.memory_space<vmem>>, vector<4x8xf32>
    %c0_3 = arith.constant 0 : index
    %c0_4 = arith.constant 0 : index
    %2 = vector.load %arg2[%c0_3, %c0_4] : memref<4x8xf32, #tpu.memory_space<vmem>>, vector<4x8xf32>
    %cst = arith.constant 5.000000e-01 : f32
    %3 = vector.broadcast %cst : f32 to vector<4x8xf32>
    %4 = arith.mulf %3, %2 : vector<4x8xf32>
    %5 = math.exp %4 : vector<4x8xf32>
    %6 = arith.mulf %1, %5 : vector<4x8xf32>
    %7 = arith.addf %0, %6 : vector<4x8xf32>
    %c0_5 = arith.constant 0 : index
    %c0_6 = arith.constant 0 : index
    %8 = vector.load %arg4[%c0_5, %c0_6] : memref<8x16xf32, #tpu.memory_space<vmem>>, vector<8x16xf32>
    %cst_7 = arith.constant dense<0.000000e+00> : vector<4x16xf32>
    %9 = tpu.matmul %7, %8, %cst_7 {dimension_numbers = #tpu.dot_dimension_numbers<[1], [0], [0], [1], [0, 0, 1, 1], [], []>} : vector<4x8xf32>, vector<8x16xf32>, vector<4x16xf32> -> vector<4x16xf32>
    %c0_8 = arith.constant 0 : index
    %c0_9 = arith.constant 0 : index
    %10 = vector.load %arg5[%c0_8, %c0_9] : memref<1x16xf32, #tpu.memory_space<vmem>>, vector<1x16xf32>
    %11 = vector.broadcast %10 : vector<1x16xf32> to vector<4x16xf32>
    %12 = arith.addf %9, %11 : vector<4x16xf32>
    %cst_10 = arith.constant 0.000000e+00 : f32
    %13 = vector.broadcast %cst_10 : f32 to vector<4x16xf32>
    %14 = arith.maximumf %12, %13 : vector<4x16xf32>
    %c0_11 = arith.constant 0 : index
    %c0_12 = arith.constant 0 : index
    %15 = vector.load %arg6[%c0_11, %c0_12] : memref<16x32xf32, #tpu.memory_space<vmem>>, vector<16x32xf32>
    %cst_13 = arith.constant dense<0.000000e+00> : vector<4x32xf32>
    %16 = tpu.matmul %14, %15, %cst_13 {dimension_numbers = #tpu.dot_dimension_numbers<[1], [0], [0], [1], [0, 0, 1, 1], [], []>} : vector<4x16xf32>, vector<16x32xf32>, vector<4x32xf32> -> vector<4x32xf32>
    %c0_14 = arith.constant 0 : index
    %c0_15 = arith.constant 0 : index
    %17 = vector.load %arg7[%c0_14, %c0_15] : memref<1x32xf32, #tpu.memory_space<vmem>>, vector<1x32xf32>
    %18 = vector.broadcast %17 : vector<1x32xf32> to vector<4x32xf32>
    %19 = arith.addf %16, %18 : vector<4x32xf32>
    %cst_16 = arith.constant 0.000000e+00 : f32
    %20 = vector.broadcast %cst_16 : f32 to vector<4x32xf32>
    %21 = arith.maximumf %19, %20 : vector<4x32xf32>
    %c0_17 = arith.constant 0 : index
    %c0_18 = arith.constant 0 : index
    %22 = vector.load %arg8[%c0_17, %c0_18] : memref<32x16xf32, #tpu.memory_space<vmem>>, vector<32x16xf32>
    %cst_19 = arith.constant dense<0.000000e+00> : vector<4x16xf32>
    %23 = tpu.matmul %21, %22, %cst_19 {dimension_numbers = #tpu.dot_dimension_numbers<[1], [0], [0], [1], [0, 0, 1, 1], [], []>} : vector<4x32xf32>, vector<32x16xf32>, vector<4x16xf32> -> vector<4x16xf32>
    %c0_20 = arith.constant 0 : index
    %c0_21 = arith.constant 0 : index
    %24 = vector.load %arg9[%c0_20, %c0_21] : memref<1x16xf32, #tpu.memory_space<vmem>>, vector<1x16xf32>
    %25 = vector.broadcast %24 : vector<1x16xf32> to vector<4x16xf32>
    %26 = arith.addf %23, %25 : vector<4x16xf32>
    %cst_22 = arith.constant 0.000000e+00 : f32
    %27 = vector.broadcast %cst_22 : f32 to vector<4x16xf32>
    %28 = arith.maximumf %26, %27 : vector<4x16xf32>
    %c0_23 = arith.constant 0 : index
    %c0_24 = arith.constant 0 : index
    %29 = vector.load %arg10[%c0_23, %c0_24] : memref<4x16xf32, #tpu.memory_space<vmem>>, vector<4x16xf32>
    tpu.vector_store %arg10[%c0_23, %c0_24], %28 {strides = array<i32>} : memref<4x16xf32, #tpu.memory_space<vmem>>, vector<4x16xf32>,
    %c0_25 = arith.constant 0 : index
    %c0_26 = arith.constant 0 : index
    %30 = vector.load %arg11[%c0_25, %c0_26] : memref<4x8xf32, #tpu.memory_space<vmem>>, vector<4x8xf32>
    tpu.vector_store %arg11[%c0_25, %c0_26], %7 {strides = array<i32>} : memref<4x8xf32, #tpu.memory_space<vmem>>, vector<4x8xf32>,
    return
  }
  func.func @transform_0(%arg0: i32) -> (i32, i32) {
    %c0_i32 = arith.constant 0 : i32
    %c0_i32_0 = arith.constant 0 : i32
    %c0_i32_1 = arith.constant 0 : i32
    return %c0_i32, %c0_i32_0 : i32, i32
  }
  func.func @transform_1(%arg0: i32) -> (i32, i32) {
    %c0_i32 = arith.constant 0 : i32
    %c0_i32_0 = arith.constant 0 : i32
    %c0_i32_1 = arith.constant 0 : i32
    return %c0_i32, %c0_i32_0 : i32, i32
  }
  func.func @transform_2(%arg0: i32) -> (i32, i32) {
    %c0_i32 = arith.constant 0 : i32
    %c0_i32_0 = arith.constant 0 : i32
    %c0_i32_1 = arith.constant 0 : i32
    return %c0_i32, %c0_i32_0 : i32, i32
  }
  func.func @transform_3(%arg0: i32) -> (i32, i32) {
    %c0_i32 = arith.constant 0 : i32
    %c0_i32_0 = arith.constant 0 : i32
    %c0_i32_1 = arith.constant 0 : i32
    return %c0_i32, %c0_i32_0 : i32, i32
  }
  func.func @transform_4(%arg0: i32) -> (i32, i32) {
    %c0_i32 = arith.constant 0 : i32
    %c0_i32_0 = arith.constant 0 : i32
    %c0_i32_1 = arith.constant 0 : i32
    return %c0_i32, %c0_i32_0 : i32, i32
  }
  func.func @transform_5(%arg0: i32) -> (i32, i32) {
    %c0_i32 = arith.constant 0 : i32
    %c0_i32_0 = arith.constant 0 : i32
    %c0_i32_1 = arith.constant 0 : i32
    return %c0_i32, %c0_i32_0 : i32, i32
  }
  func.func @transform_6(%arg0: i32) -> (i32, i32) {
    %c0_i32 = arith.constant 0 : i32
    %c0_i32_0 = arith.constant 0 : i32
    %c0_i32_1 = arith.constant 0 : i32
    return %c0_i32, %c0_i32_0 : i32, i32
  }
  func.func @transform_7(%arg0: i32) -> (i32, i32) {
    %c0_i32 = arith.constant 0 : i32
    %c0_i32_0 = arith.constant 0 : i32
    %c0_i32_1 = arith.constant 0 : i32
    return %c0_i32, %c0_i32_0 : i32, i32
  }
  func.func @transform_8(%arg0: i32) -> (i32, i32) {
    %c0_i32 = arith.constant 0 : i32
    %c0_i32_0 = arith.constant 0 : i32
    %c0_i32_1 = arith.constant 0 : i32
    return %c0_i32, %c0_i32_0 : i32, i32
  }
  func.func @transform_9(%arg0: i32) -> (i32, i32) {
    %c0_i32 = arith.constant 0 : i32
    %c0_i32_0 = arith.constant 0 : i32
    %c0_i32_1 = arith.constant 0 : i32
    return %c0_i32, %c0_i32_0 : i32, i32
  }
  func.func @transform_10(%arg0: i32) -> (i32, i32) {
    %c0_i32 = arith.constant 0 : i32
    %c0_i32_0 = arith.constant 0 : i32
    %c0_i32_1 = arith.constant 0 : i32
    return %c0_i32, %c0_i32_0 : i32, i32
  }
}

</mosaic_0001>

<llo_original>
// kernel: gmvae_forward.3
$region0: #{gmvae_forward.3}
  #allocation0 [shape = 'u32[]', space=smem, size = 0x4, offset = 0x4, fixed_abs, tag = 'smem constant byte address 0x4 - core index']
  #allocation1 [shape = 'u32[144,128]{1,0:T(1,128)}', space=vmem, size = 0x12000, scoped, tag = 'internal scratch']
  %s0 = inlined_call_operand.vmem [shape: f32[4,8], index: 0, kind: input, shape index: {}]
  %s1 = inlined_call_operand.vmem [shape: f32[4,8], index: 1, kind: input, shape index: {}]
  %s2 = inlined_call_operand.vmem [shape: f32[4,8], index: 2, kind: input, shape index: {}]
  %s3 = inlined_call_operand.vmem [shape: f32[8,16], index: 3, kind: input, shape index: {}]
  %s4 = inlined_call_operand.vmem [shape: f32[1,16], index: 4, kind: input, shape index: {}]
  %s5 = inlined_call_operand.vmem [shape: f32[16,32], index: 5, kind: input, shape index: {}]
  %s6 = inlined_call_operand.vmem [shape: f32[1,32], index: 6, kind: input, shape index: {}]
  %s7 = inlined_call_operand.vmem [shape: f32[32,16], index: 7, kind: input, shape index: {}]
  %s8 = inlined_call_operand.vmem [shape: f32[1,16], index: 8, kind: input, shape index: {}]
  %s9 = inlined_call_operand.hbm [shape: f32[4,16], index: 9, kind: output, shape index: {0}]
  %s10 = inlined_call_operand.hbm [shape: f32[4,8], index: 10, kind: output, shape index: {1}]
  %11 = xla_tuple %s9, %s10
  %s12 = sld [smem:[#allocation0]]
  $region54: #{gmvae_forward.3} parent=0
    _
  %s14 = ssub.s32 1, %s12
  %s15 = scalar_select 0, %s14, %s12
  $region1: #{gmvae_forward.3} parent=0
    #allocation2 [shape = 'u8[2048]{0}', space=vmem, size = 0x800, scoped, tag = 'output window, operand 0, single buffered']
    #allocation3 [shape = 's32[1]{0}', space=sflag, size = 0x4, scoped, tag = 'scoped memory for gmvae_forward.3']
    #allocation4 [shape = 'u8[2048]{0}', space=vmem, size = 0x800, scoped, tag = 'output window, operand 1, single buffered']
    #allocation5 [shape = 's32[1]{0}', space=sflag, size = 0x4, scoped, tag = 'scoped memory for gmvae_forward.3']
    %16 = vsyncpa [#allocation3], 0
    %17 = vsyncpa [#allocation5], 0
    // Predicated region
    $region2: #{gmvae_forward.3} parent=1 // pred_check
      _
    $region3: #{gmvae_forward.3} parent=1 // pred_check_branch
      %19 = sbr.rel (0) target = $region5
    $region4: #{gmvae_forward.3} parent=1 // pred_region
      _
    $region5: #{gmvae_forward.3} parent=1 // pred_fallthru
      _
    // Predicated region
    $region6: #{gmvae_forward.3} parent=1 // pred_check
      _
    $region7: #{gmvae_forward.3} parent=1 // pred_check_branch
      %21 = sbr.rel (0) target = $region9
    $region8: #{gmvae_forward.3} parent=1 // pred_region
      _
    $region9: #{gmvae_forward.3} parent=1 // pred_fallthru
      _
    // Predicated region
    $region10: #{gmvae_forward.3} parent=1 // pred_check
      _
    $region11: #{gmvae_forward.3} parent=1 // pred_check_branch
      %23 = sbr.rel (0) target = $region13
    $region12: #{gmvae_forward.3} parent=1 // pred_region
      _
    $region13: #{gmvae_forward.3} parent=1 // pred_fallthru
      _
    // Predicated region
    $region14: #{gmvae_forward.3} parent=1 // pred_check
      _
    $region15: #{gmvae_forward.3} parent=1 // pred_check_branch
      %25 = sbr.rel (0) target = $region17
    $region16: #{gmvae_forward.3} parent=1 // pred_region
      _
    $region17: #{gmvae_forward.3} parent=1 // pred_fallthru
      _
    // Predicated region
    $region18: #{gmvae_forward.3} parent=1 // pred_check
      _
    $region19: #{gmvae_forward.3} parent=1 // pred_check_branch
      %27 = sbr.rel (0) target = $region21
    $region20: #{gmvae_forward.3} parent=1 // pred_region
      _
    $region21: #{gmvae_forward.3} parent=1 // pred_fallthru
      _
    // Predicated region
    $region22: #{gmvae_forward.3} parent=1 // pred_check
      _
    $region23: #{gmvae_forward.3} parent=1 // pred_check_branch
      %29 = sbr.rel (0) target = $region25
    $region24: #{gmvae_forward.3} parent=1 // pred_region
      _
    $region25: #{gmvae_forward.3} parent=1 // pred_fallthru
      _
    // Predicated region
    $region26: #{gmvae_forward.3} parent=1 // pred_check
      _
    $region27: #{gmvae_forward.3} parent=1 // pred_check_branch
      %31 = sbr.rel (0) target = $region29
    $region28: #{gmvae_forward.3} parent=1 // pred_region
      _
    $region29: #{gmvae_forward.3} parent=1 // pred_fallthru
      _
    // Predicated region
    $region30: #{gmvae_forward.3} parent=1 // pred_check
      _
    $region31: #{gmvae_forward.3} parent=1 // pred_check_branch
      %33 = sbr.rel (0) target = $region33
    $region32: #{gmvae_forward.3} parent=1 // pred_region
      _
    $region33: #{gmvae_forward.3} parent=1 // pred_fallthru
      _
    // Predicated region
    $region34: #{gmvae_forward.3} parent=1 // pred_check
      _
    $region35: #{gmvae_forward.3} parent=1 // pred_check_branch
      %35 = sbr.rel (0) target = $region37
    $region36: #{gmvae_forward.3} parent=1 // pred_region
      _
    $region37: #{gmvae_forward.3} parent=1 // pred_fallthru
      _
    %v36 = vld [vmem:[%s0] sm:$0xf]
    %v37 = vld [vmem:[%s2] sm:$0xf]
    %v38 = vld [vmem:[%s1] sm:$0xf]
    %v39 = vmul.f32 %v38, 0.5
    %v40 = vmul.f32 %v39, 1.442695
    %v41 = vpow.pop %v40
    %v42 = vmul.f32 %v37, %v41
    %v43 = vadd.f32 %v36, %v42
    %v44 = vld [vmem:[%s3] sm:$0xff]
    %v45 = vld [vmem:[%s4] sm:$0x1]
    %v47 = vlaneseq
    %v48 = vshrl.u32 %v47, 7
    %v49 = vsub.s32 0, %v48
    %v50 = vrot.slane %v45, %v49
    %vm52 = vcmask 64512
    %v54 = vsel %vm52, %v43, 0
    %56 = vmatprep.subr.mxu0 0.0
    %57 = vmatpush1.msra.mxu0 %v44
    %58 = vmatprep.subr.mxu0 0.0
    %59 = vmatpush1.msra.mxu0 0.0
    %60 = vmatprep.subr.mxu0 0.0
    %61 = vmatpush1.msra.mxu0 0.0
    %62 = vmatprep.subr.mxu0 0.0
    %63 = vmatpush1.msra.mxu0 0.0
    %64 = vmatprep.subr.mxu0 0.0
    %65 = vmatpush1.msra.mxu0 0.0
    %66 = vmatprep.subr.mxu0 0.0
    %67 = vmatpush1.msra.mxu0 0.0
    %68 = vmatprep.subr.mxu0 0.0
    %69 = vmatpush1.msra.mxu0 0.0
    %70 = vmatprep.subr.mxu0 0.0
    %71 = vmatpush1.msra.mxu0 0.0
    %72 = vmatprep.subr.mxu0 0.0
    %73 = vmatpush1.msra.mxu0 0.0
    %74 = vmatprep.subr.mxu0 0.0
    %75 = vmatpush1.msra.mxu0 0.0
    %76 = vmatprep.subr.mxu0 0.0
    %77 = vmatpush1.msra.mxu0 0.0
    %78 = vmatprep.subr.mxu0 0.0
    %79 = vmatpush1.msra.mxu0 0.0
    %80 = vmatprep.subr.mxu0 0.0
    %81 = vmatpush1.msra.mxu0 0.0
    %82 = vmatprep.subr.mxu0 0.0
    %83 = vmatpush1.msra.mxu0 0.0
    %84 = vmatprep.subr.mxu0 0.0
    %85 = vmatpush1.msra.mxu0 0.0
    %86 = vmatprep.subr.mxu0 0.0
    %87 = vmatpush1.msra.mxu0 0.0
    %88 = vmatprep.subr.mxu0 0.0
    %89 = vmatpush1.msra.mxu0 0.0
    %90 = vmatprep.subr.mxu0 0.0
    %91 = vmatpush1.msra.mxu0 0.0
    %92 = vmatprep.subr.mxu0 0.0
    %93 = vmatpush1.msra.mxu0 0.0
    %94 = vmatprep.subr.mxu0 0.0
    %95 = vmatpush1.msra.mxu0 0.0
    %96 = vmatprep.subr.mxu0 0.0
    %97 = vmatpush1.msra.mxu0 0.0
    %98 = vmatprep.subr.mxu0 0.0
    %99 = vmatpush1.msra.mxu0 0.0
    %100 = vmatprep.subr.mxu0 0.0
    %101 = vmatpush1.msra.mxu0 0.0
    %102 = vmatprep.subr.mxu0 0.0
    %103 = vmatpush1.msra.mxu0 0.0
    %104 = vmatprep.subr.mxu0 0.0
    %105 = vmatpush1.msra.mxu0 0.0
    %106 = vmatprep.subr.mxu0 0.0
    %107 = vmatpush1.msra.mxu0 0.0
    %108 = vmatprep.subr.mxu0 0.0
    %109 = vmatpush1.msra.mxu0 0.0
    %110 = vmatprep.subr.mxu0 0.0
    %111 = vmatpush1.msra.mxu0 0.0
    %112 = vmatprep.subr.mxu0 0.0
    %113 = vmatpush1.msra.mxu0 0.0
    %114 = vmatprep.subr.mxu0 0.0
    %115 = vmatpush1.msra.mxu0 0.0
    %116 = vmatprep.subr.mxu0 0.0
    %117 = vmatpush1.msra.mxu0 0.0
    %118 = vmatprep.subr.mxu0 0.0
    %119 = vmatpush1.msra.mxu0 0.0
    %120 = vmatprep.mubr.f32.mxu0 0.0
    %121 = vmatmul.mubr.f32.gmra.mrb[0].mxu0 %v54
    %v122 = vpop.f32.mrb[0].mxu0
    %v123 = vadd.f32 %v50, %v122
    %v124 = vpop.f32.mrb[0].mxu0
    %125 = vdwg.mxu0
    %v126 = vmax.f32 %v123, 0.0
    %v127 = vld [vmem:[%s5] sm:$0xff]
    %v128 = vld [vmem:[%s5 + $0x8] sm:$0xff]
    %v129 = vld [vmem:[%s6] sm:$0x1]
    %v131 = vlaneseq
    %v132 = vshrl.u32 %v131, 7
    %v133 = vsub.s32 0, %v132
    %v134 = vrot.slane %v129, %v133
    %vm136 = vcmask 130048
    %v138 = vsel %vm136, %v126, 0
    %140 = vmatprep.subr.mxu0 0.0
    %141 = vmatpush1.msra.mxu0 %v127
    %142 = vmatprep.subr.mxu0 0.0
    %143 = vmatpush1.msra.mxu0 %v128
    %144 = vmatprep.subr.mxu0 0.0
    %145 = vmatpush1.msra.mxu0 0.0
    %146 = vmatprep.subr.mxu0 0.0
    %147 = vmatpush1.msra.mxu0 0.0
    %148 = vmatprep.subr.mxu0 0.0
    %149 = vmatpush1.msra.mxu0 0.0
    %150 = vmatprep.subr.mxu0 0.0
    %151 = vmatpush1.msra.mxu0 0.0
    %152 = vmatprep.subr.mxu0 0.0
    %153 = vmatpush1.msra.mxu0 0.0
    %154 = vmatprep.subr.mxu0 0.0
    %155 = vmatpush1.msra.mxu0 0.0
    %156 = vmatprep.subr.mxu0 0.0
    %157 = vmatpush1.msra.mxu0 0.0
    %158 = vmatprep.subr.mxu0 0.0
    %159 = vmatpush1.msra.mxu0 0.0
    %160 = vmatprep.subr.mxu0 0.0
    %161 = vmatpush1.msra.mxu0 0.0
    %162 = vmatprep.subr.mxu0 0.0
    %163 = vmatpush1.msra.mxu0 0.0
    %164 = vmatprep.subr.mxu0 0.0
    %165 = vmatpush1.msra.mxu0 0.0
    %166 = vmatprep.subr.mxu0 0.0
    %167 = vmatpush1.msra.mxu0 0.0
    %168 = vmatprep.subr.mxu0 0.0
    %169 = vmatpush1.msra.mxu0 0.0
    %170 = vmatprep.subr.mxu0 0.0
    %171 = vmatpush1.msra.mxu0 0.0
    %172 = vmatprep.subr.mxu0 0.0
    %173 = vmatpush1.msra.mxu0 0.0
    %174 = vmatprep.subr.mxu0 0.0
    %175 = vmatpush1.msra.mxu0 0.0
    %176 = vmatprep.subr.mxu0 0.0
    %177 = vmatpush1.msra.mxu0 0.0
    %178 = vmatprep.subr.mxu0 0.0
    %179 = vmatpush1.msra.mxu0 0.0
    %180 = vmatprep.subr.mxu0 0.0
    %181 = vmatpush1.msra.mxu0 0.0
    %182 = vmatprep.subr.mxu0 0.0
    %183 = vmatpush1.msra.mxu0 0.0
    %184 = vmatprep.subr.mxu0 0.0
    %185 = vmatpush1.msra.mxu0 0.0
    %186 = vmatprep.subr.mxu0 0.0
    %187 = vmatpush1.msra.mxu0 0.0
    %188 = vmatprep.subr.mxu0 0.0
    %189 = vmatpush1.msra.mxu0 0.0
    %190 = vmatprep.subr.mxu0 0.0
    %191 = vmatpush1.msra.mxu0 0.0
    %192 = vmatprep.subr.mxu0 0.0
    %193 = vmatpush1.msra.mxu0 0.0
    %194 = vmatprep.subr.mxu0 0.0
    %195 = vmatpush1.msra.mxu0 0.0
    %196 = vmatprep.subr.mxu0 0.0
    %197 = vmatpush1.msra.mxu0 0.0
    %198 = vmatprep.subr.mxu0 0.0
    %199 = vmatpush1.msra.mxu0 0.0
    %200 = vmatprep.subr.mxu0 0.0
    %201 = vmatpush1.msra.mxu0 0.0
    %202 = vmatprep.subr.mxu0 0.0
    %203 = vmatpush1.msra.mxu0 0.0
    %204 = vmatprep.mubr.f32.mxu0 0.0
    %205 = vmatmul.mubr.f32.gmra.mrb[0].mxu0 %v138
    %v206 = vpop.f32.mrb[0].mxu0
    %v207 = vadd.f32 %v134, %v206
    %v208 = vpop.f32.mrb[0].mxu0
    %209 = vdwg.mxu0
    %v210 = vmax.f32 %v207, 0.0
    %v211 = vld [vmem:[%s7] sm:$0xff]
    %v212 = vld [vmem:[%s7 + $0x8] sm:$0xff]
    %v213 = vld [vmem:[%s7 + $0x10] sm:$0xff]
    %v214 = vld [vmem:[%s7 + $0x18] sm:$0xff]
    %v215 = vld [vmem:[%s8] sm:$0x1]
    %v217 = vlaneseq
    %v218 = vshrl.u32 %v217, 7
    %v219 = vsub.s32 0, %v218
    %v220 = vrot.slane %v215, %v219
    %vm222 = vcmask 261120
    %v224 = vsel %vm222, %v210, 0
    %226 = vmatprep.subr.mxu0 0.0
    %227 = vmatpush1.msra.mxu0 %v211
    %228 = vmatprep.subr.mxu0 0.0
    %229 = vmatpush1.msra.mxu0 %v212
    %230 = vmatprep.subr.mxu0 0.0
    %231 = vmatpush1.msra.mxu0 %v213
    %232 = vmatprep.subr.mxu0 0.0
    %233 = vmatpush1.msra.mxu0 %v214
    %234 = vmatprep.subr.mxu0 0.0
    %235 = vmatpush1.msra.mxu0 0.0
    %236 = vmatprep.subr.mxu0 0.0
    %237 = vmatpush1.msra.mxu0 0.0
    %238 = vmatprep.subr.mxu0 0.0
    %239 = vmatpush1.msra.mxu0 0.0
    %240 = vmatprep.subr.mxu0 0.0
    %241 = vmatpush1.msra.mxu0 0.0
    %242 = vmatprep.subr.mxu0 0.0
    %243 = vmatpush1.msra.mxu0 0.0
    %244 = vmatprep.subr.mxu0 0.0
    %245 = vmatpush1.msra.mxu0 0.0
    %246 = vmatprep.subr.mxu0 0.0
    %247 = vmatpush1.msra.mxu0 0.0
    %248 = vmatprep.subr.mxu0 0.0
    %249 = vmatpush1.msra.mxu0 0.0
    %250 = vmatprep.subr.mxu0 0.0
    %251 = vmatpush1.msra.mxu0 0.0
    %252 = vmatprep.subr.mxu0 0.0
    %253 = vmatpush1.msra.mxu0 0.0
    %254 = vmatprep.subr.mxu0 0.0
    %255 = vmatpush1.msra.mxu0 0.0
    %256 = vmatprep.subr.mxu0 0.0
    %257 = vmatpush1.msra.mxu0 0.0
    %258 = vmatprep.subr.mxu0 0.0
    %259 = vmatpush1.msra.mxu0 0.0
    %260 = vmatprep.subr.mxu0 0.0
    %261 = vmatpush1.msra.mxu0 0.0
    %262 = vmatprep.subr.mxu0 0.0
    %263 = vmatpush1.msra.mxu0 0.0
    %264 = vmatprep.subr.mxu0 0.0
    %265 = vmatpush1.msra.mxu0 0.0
    %266 = vmatprep.subr.mxu0 0.0
    %267 = vmatpush1.msra.mxu0 0.0
    %268 = vmatprep.subr.mxu0 0.0
    %269 = vmatpush1.msra.mxu0 0.0
    %270 = vmatprep.subr.mxu0 0.0
    %271 = vmatpush1.msra.mxu0 0.0
    %272 = vmatprep.subr.mxu0 0.0
    %273 = vmatpush1.msra.mxu0 0.0
    %274 = vmatprep.subr.mxu0 0.0
    %275 = vmatpush1.msra.mxu0 0.0
    %276 = vmatprep.subr.mxu0 0.0
    %277 = vmatpush1.msra.mxu0 0.0
    %278 = vmatprep.subr.mxu0 0.0
    %279 = vmatpush1.msra.mxu0 0.0
    %280 = vmatprep.subr.mxu0 0.0
    %281 = vmatpush1.msra.mxu0 0.0
    %282 = vmatprep.subr.mxu0 0.0
    %283 = vmatpush1.msra.mxu0 0.0
    %284 = vmatprep.subr.mxu0 0.0
    %285 = vmatpush1.msra.mxu0 0.0
    %286 = vmatprep.subr.mxu0 0.0
    %287 = vmatpush1.msra.mxu0 0.0
    %288 = vmatprep.subr.mxu0 0.0
    %289 = vmatpush1.msra.mxu0 0.0
    %290 = vmatprep.mubr.f32.mxu0 0.0
    %291 = vmatmul.mubr.f32.gmra.mrb[0].mxu0 %v224
    %v292 = vpop.f32.mrb[0].mxu0
    %v293 = vadd.f32 %v220, %v292
    %v294 = vpop.f32.mrb[0].mxu0
    %295 = vdwg.mxu0
    %v296 = vmax.f32 %v293, 0.0
    %vm297 = vcmask 125952
    %298 = vst.msk [vmem:[#allocation2] sm:$0xf] %vm297, %v296
    %vm299 = vcmask 60416
    %300 = vst.msk [vmem:[#allocation4] sm:$0xf] %vm299, %v43
    // Predicated region
    $region38: #{gmvae_forward.3} parent=1 // pred_check
      _
    $region39: #{gmvae_forward.3} parent=1 // pred_check_branch
      %302 = sbr.rel (0) target = $region41
    $region40: #{gmvae_forward.3} parent=1 // pred_region
      %s304 = ssub.s32 64, 64
      %305 = vsyncadd [#allocation3], %s304
      %s307 = sshll.u32 [#allocation2], 4
      %s308 = int_to_ptr.vmem [resolvable:$true] %s307
      %310 = dma.vmem_to_hbm [thread:$0]  %s308, 64, %s9, [#allocation3]
    $region41: #{gmvae_forward.3} parent=1 // pred_fallthru
      _
    // Predicated region
    $region42: #{gmvae_forward.3} parent=1 // pred_check
      _
    $region43: #{gmvae_forward.3} parent=1 // pred_check_branch
      %312 = sbr.rel (0) target = $region45
    $region44: #{gmvae_forward.3} parent=1 // pred_region
      %s314 = ssub.s32 64, 64
      %315 = vsyncadd [#allocation5], %s314
      %s317 = sshll.u32 [#allocation4], 4
      %s318 = int_to_ptr.vmem [resolvable:$true] %s317
      %320 = dma.vmem_to_hbm [thread:$0]  %s318, 64, %s10, [#allocation5]
    $region45: #{gmvae_forward.3} parent=1 // pred_fallthru
      _
    // Predicated region
    $region46: #{gmvae_forward.3} parent=1 // pred_check
      _
    $region47: #{gmvae_forward.3} parent=1 // pred_check_branch
      %322 = sbr.rel (0) target = $region49
    $region48: #{gmvae_forward.3} parent=1 // pred_region
      %323 = dma.done [#allocation3], 64
    $region49: #{gmvae_forward.3} parent=1 // pred_fallthru
      _
    // Predicated region
    $region50: #{gmvae_forward.3} parent=1 // pred_check
      _
    $region51: #{gmvae_forward.3} parent=1 // pred_check_branch
      %325 = sbr.rel (0) target = $region53
    $region52: #{gmvae_forward.3} parent=1 // pred_region
      %326 = dma.done [#allocation5], 64
    $region53: #{gmvae_forward.3} parent=1 // pred_fallthru
      _
    %327 = vsyncpa [#allocation3], 1
    %328 = vsyncpa [#allocation5], 1

// kernel: gmvae_forward.2
$region0: #{gmvae_forward.2}
  #allocation0 [shape = 'u32[]', space=smem, size = 0x4, offset = 0x4, fixed_abs, tag = 'smem constant byte address 0x4 - core index']
  #allocation1 [shape = 'u32[144,128]{1,0:T(1,128)}', space=vmem, size = 0x12000, scoped, tag = 'internal scratch']
  %s0 = inlined_call_operand.vmem [shape: f32[8,16], index: 0, kind: input, shape index: {}]
  %s1 = inlined_call_operand.vmem [shape: f32[16,16], index: 1, kind: input, shape index: {}]
  %s2 = inlined_call_operand.vmem [shape: f32[1,16], index: 2, kind: input, shape index: {}]
  %s3 = inlined_call_operand.vmem [shape: f32[16,32], index: 3, kind: input, shape index: {}]
  %s4 = inlined_call_operand.vmem [shape: f32[1,32], index: 4, kind: input, shape index: {}]
  %s5 = inlined_call_operand.vmem [shape: f32[32,384], index: 5, kind: input, shape index: {}]
  %s6 = inlined_call_operand.vmem [shape: f32[1,384], index: 6, kind: input, shape index: {}]
  %s7 = inlined_call_operand.vmem [shape: f32[8,384], index: 7, kind: output, shape index: {}]
  %s8 = sld [smem:[#allocation0]]
  $region38: #{gmvae_forward.2} parent=0
    _
  %s10 = ssub.s32 1, %s8
  %s11 = scalar_select 0, %s10, %s8
  // Predicated region
  $region2: #{gmvae_forward.2} parent=0 // pred_check
    _
  $region3: #{gmvae_forward.2} parent=0 // pred_check_branch
    %13 = sbr.rel (0) target = $region5
  $region4: #{gmvae_forward.2} parent=0 // pred_region
    _
  $region5: #{gmvae_forward.2} parent=0 // pred_fallthru
    _
  // Predicated region
  $region6: #{gmvae_forward.2} parent=0 // pred_check
    _
  $region7: #{gmvae_forward.2} parent=0 // pred_check_branch
    %15 = sbr.rel (0) target = $region9
  $region8: #{gmvae_forward.2} parent=0 // pred_region
    _
  $region9: #{gmvae_forward.2} parent=0 // pred_fallthru
    _
  // Predicated region
  $region10: #{gmvae_forward.2} parent=0 // pred_check
    _
  $region11: #{gmvae_forward.2} parent=0 // pred_check_branch
    %17 = sbr.rel (0) target = $region13
  $region12: #{gmvae_forward.2} parent=0 // pred_region
    _
  $region13: #{gmvae_forward.2} parent=0 // pred_fallthru
    _
  // Predicated region
  $region14: #{gmvae_forward.2} parent=0 // pred_check
    _
  $region15: #{gmvae_forward.2} parent=0 // pred_check_branch
    %19 = sbr.rel (0) target = $region17
  $region16: #{gmvae_forward.2} parent=0 // pred_region
    _
  $region17: #{gmvae_forward.2} parent=0 // pred_fallthru
    _
  // Predicated region
  $region18: #{gmvae_forward.2} parent=0 // pred_check
    _
  $region19: #{gmvae_forward.2} parent=0 // pred_check_branch
    %21 = sbr.rel (0) target = $region21
  $region20: #{gmvae_forward.2} parent=0 // pred_region
    _
  $region21: #{gmvae_forward.2} parent=0 // pred_fallthru
    _
  // Predicated region
  $region22: #{gmvae_forward.2} parent=0 // pred_check
    _
  $region23: #{gmvae_forward.2} parent=0 // pred_check_branch
    %23 = sbr.rel (0) target = $region25
  $region24: #{gmvae_forward.2} parent=0 // pred_region
    _
  $region25: #{gmvae_forward.2} parent=0 // pred_fallthru
    _
  // Predicated region
  $region26: #{gmvae_forward.2} parent=0 // pred_check
    _
  $region27: #{gmvae_forward.2} parent=0 // pred_check_branch
    %25 = sbr.rel (0) target = $region29
  $region28: #{gmvae_forward.2} parent=0 // pred_region
    _
  $region29: #{gmvae_forward.2} parent=0 // pred_fallthru
    _
  %v26 = vld [vmem:[%s0] sm:$0xff]
  %v27 = vld [vmem:[%s1] sm:$0xff]
  %v28 = vld [vmem:[%s1 + $0x8] sm:$0xff]
  %v29 = vld [vmem:[%s2] sm:$0x1]
  %v31 = vlaneseq
  %v32 = vshrl.u32 %v31, 7
  %v33 = vsub.s32 0, %v32
  %v34 = vrot.slane %v29, %v33
  %vm36 = vcmask 130048
  %v38 = vsel %vm36, %v26, 0
  %40 = vmatprep.subr.mxu0 0.0
  %41 = vmatpush1.msra.mxu0 %v27
  %42 = vmatprep.subr.mxu0 0.0
  %43 = vmatpush1.msra.mxu0 %v28
  %44 = vmatprep.subr.mxu0 0.0
  %45 = vmatpush1.msra.mxu0 0.0
  %46 = vmatprep.subr.mxu0 0.0
  %47 = vmatpush1.msra.mxu0 0.0
  %48 = vmatprep.subr.mxu0 0.0
  %49 = vmatpush1.msra.mxu0 0.0
  %50 = vmatprep.subr.mxu0 0.0
  %51 = vmatpush1.msra.mxu0 0.0
  %52 = vmatprep.subr.mxu0 0.0
  %53 = vmatpush1.msra.mxu0 0.0
  %54 = vmatprep.subr.mxu0 0.0
  %55 = vmatpush1.msra.mxu0 0.0
  %56 = vmatprep.subr.mxu0 0.0
  %57 = vmatpush1.msra.mxu0 0.0
  %58 = vmatprep.subr.mxu0 0.0
  %59 = vmatpush1.msra.mxu0 0.0
  %60 = vmatprep.subr.mxu0 0.0
  %61 = vmatpush1.msra.mxu0 0.0
  %62 = vmatprep.subr.mxu0 0.0
  %63 = vmatpush1.msra.mxu0 0.0
  %64 = vmatprep.subr.mxu0 0.0
  %65 = vmatpush1.msra.mxu0 0.0
  %66 = vmatprep.subr.mxu0 0.0
  %67 = vmatpush1.msra.mxu0 0.0
  %68 = vmatprep.subr.mxu0 0.0
  %69 = vmatpush1.msra.mxu0 0.0
  %70 = vmatprep.subr.mxu0 0.0
  %71 = vmatpush1.msra.mxu0 0.0
  %72 = vmatprep.subr.mxu0 0.0
  %73 = vmatpush1.msra.mxu0 0.0
  %74 = vmatprep.subr.mxu0 0.0
  %75 = vmatpush1.msra.mxu0 0.0
  %76 = vmatprep.subr.mxu0 0.0
  %77 = vmatpush1.msra.mxu0 0.0
  %78 = vmatprep.subr.mxu0 0.0
  %79 = vmatpush1.msra.mxu0 0.0
  %80 = vmatprep.subr.mxu0 0.0
  %81 = vmatpush1.msra.mxu0 0.0
  %82 = vmatprep.subr.mxu0 0.0
  %83 = vmatpush1.msra.mxu0 0.0
  %84 = vmatprep.subr.mxu0 0.0
  %85 = vmatpush1.msra.mxu0 0.0
  %86 = vmatprep.subr.mxu0 0.0
  %87 = vmatpush1.msra.mxu0 0.0
  %88 = vmatprep.subr.mxu0 0.0
  %89 = vmatpush1.msra.mxu0 0.0
  %90 = vmatprep.subr.mxu0 0.0
  %91 = vmatpush1.msra.mxu0 0.0
  %92 = vmatprep.subr.mxu0 0.0
  %93 = vmatpush1.msra.mxu0 0.0
  %94 = vmatprep.subr.mxu0 0.0
  %95 = vmatpush1.msra.mxu0 0.0
  %96 = vmatprep.subr.mxu0 0.0
  %97 = vmatpush1.msra.mxu0 0.0
  %98 = vmatprep.subr.mxu0 0.0
  %99 = vmatpush1.msra.mxu0 0.0
  %100 = vmatprep.subr.mxu0 0.0
  %101 = vmatpush1.msra.mxu0 0.0
  %102 = vmatprep.subr.mxu0 0.0
  %103 = vmatpush1.msra.mxu0 0.0
  %104 = vmatprep.mubr.f32.mxu0 0.0
  %105 = vmatmul.mubr.f32.gmra.mrb[0].mxu0 %v38
  %v106 = vpop.f32.mrb[0].mxu0
  %v107 = vadd.f32 %v34, %v106
  %v108 = vpop.f32.mrb[0].mxu0
  %109 = vdwg.mxu0
  %v110 = vmax.f32 %v107, 0.0
  %v111 = vld [vmem:[%s3] sm:$0xff]
  %v112 = vld [vmem:[%s3 + $0x8] sm:$0xff]
  %v113 = vld [vmem:[%s4] sm:$0x1]
  %v115 = vlaneseq
  %v116 = vshrl.u32 %v115, 7
  %v117 = vsub.s32 0, %v116
  %v118 = vrot.slane %v113, %v117
  %v121 = vsel %vm36, %v110, 0
  %123 = vmatprep.subr.mxu0 0.0
  %124 = vmatpush1.msra.mxu0 %v111
  %125 = vmatprep.subr.mxu0 0.0
  %126 = vmatpush1.msra.mxu0 %v112
  %127 = vmatprep.subr.mxu0 0.0
  %128 = vmatpush1.msra.mxu0 0.0
  %129 = vmatprep.subr.mxu0 0.0
  %130 = vmatpush1.msra.mxu0 0.0
  %131 = vmatprep.subr.mxu0 0.0
  %132 = vmatpush1.msra.mxu0 0.0
  %133 = vmatprep.subr.mxu0 0.0
  %134 = vmatpush1.msra.mxu0 0.0
  %135 = vmatprep.subr.mxu0 0.0
  %136 = vmatpush1.msra.mxu0 0.0
  %137 = vmatprep.subr.mxu0 0.0
  %138 = vmatpush1.msra.mxu0 0.0
  %139 = vmatprep.subr.mxu0 0.0
  %140 = vmatpush1.msra.mxu0 0.0
  %141 = vmatprep.subr.mxu0 0.0
  %142 = vmatpush1.msra.mxu0 0.0
  %143 = vmatprep.subr.mxu0 0.0
  %144 = vmatpush1.msra.mxu0 0.0
  %145 = vmatprep.subr.mxu0 0.0
  %146 = vmatpush1.msra.mxu0 0.0
  %147 = vmatprep.subr.mxu0 0.0
  %148 = vmatpush1.msra.mxu0 0.0
  %149 = vmatprep.subr.mxu0 0.0
  %150 = vmatpush1.msra.mxu0 0.0
  %151 = vmatprep.subr.mxu0 0.0
  %152 = vmatpush1.msra.mxu0 0.0
  %153 = vmatprep.subr.mxu0 0.0
  %154 = vmatpush1.msra.mxu0 0.0
  %155 = vmatprep.subr.mxu0 0.0
  %156 = vmatpush1.msra.mxu0 0.0
  %157 = vmatprep.subr.mxu0 0.0
  %158 = vmatpush1.msra.mxu0 0.0
  %159 = vmatprep.subr.mxu0 0.0
  %160 = vmatpush1.msra.mxu0 0.0
  %161 = vmatprep.subr.mxu0 0.0
  %162 = vmatpush1.msra.mxu0 0.0
  %163 = vmatprep.subr.mxu0 0.0
  %164 = vmatpush1.msra.mxu0 0.0
  %165 = vmatprep.subr.mxu0 0.0
  %166 = vmatpush1.msra.mxu0 0.0
  %167 = vmatprep.subr.mxu0 0.0
  %168 = vmatpush1.msra.mxu0 0.0
  %169 = vmatprep.subr.mxu0 0.0
  %170 = vmatpush1.msra.mxu0 0.0
  %171 = vmatprep.subr.mxu0 0.0
  %172 = vmatpush1.msra.mxu0 0.0
  %173 = vmatprep.subr.mxu0 0.0
  %174 = vmatpush1.msra.mxu0 0.0
  %175 = vmatprep.subr.mxu0 0.0
  %176 = vmatpush1.msra.mxu0 0.0
  %177 = vmatprep.subr.mxu0 0.0
  %178 = vmatpush1.msra.mxu0 0.0
  %179 = vmatprep.subr.mxu0 0.0
  %180 = vmatpush1.msra.mxu0 0.0
  %181 = vmatprep.subr.mxu0 0.0
  %182 = vmatpush1.msra.mxu0 0.0
  %183 = vmatprep.subr.mxu0 0.0
  %184 = vmatpush1.msra.mxu0 0.0
  %185 = vmatprep.subr.mxu0 0.0
  %186 = vmatpush1.msra.mxu0 0.0
  %187 = vmatprep.mubr.f32.mxu0 0.0
  %188 = vmatmul.mubr.f32.gmra.mrb[0].mxu0 %v121
  %v189 = vpop.f32.mrb[0].mxu0
  %v190 = vadd.f32 %v118, %v189
  %v191 = vpop.f32.mrb[0].mxu0
  %192 = vdwg.mxu0
  %v193 = vmax.f32 %v190, 0.0
  %v194 = vld [vmem:[%s5] sm:$0xff]
  %v195 = vld [vmem:[%s5 + $0x8] sm:$0xff]
  %v196 = vld [vmem:[%s5 + $0x10] sm:$0xff]
  %v197 = vld [vmem:[%s5 + $0x18] sm:$0xff]
  %v198 = vld [vmem:[%s5 + $0x20] sm:$0xff]
  %v199 = vld [vmem:[%s5 + $0x28] sm:$0xff]
  %v200 = vld [vmem:[%s5 + $0x30] sm:$0xff]
  %v201 = vld [vmem:[%s5 + $0x38] sm:$0xff]
  %v202 = vld [vmem:[%s5 + $0x40] sm:$0xff]
  %v203 = vld [vmem:[%s5 + $0x48] sm:$0xff]
  %v204 = vld [vmem:[%s5 + $0x50] sm:$0xff]
  %v205 = vld [vmem:[%s5 + $0x58] sm:$0xff]
  %v206 = vld [vmem:[%s6] sm:$0x7]
  %v208 = vlaneseq
  %v209 = vshrl.u32 %v208, 7
  %v210 = vsub.s32 0, %v209
  %v211 = vrot.slane %v206, %v210
  %v212 = vlaneseq
  %v213 = vshrl.u32 %v212, 7
  %v214 = vsub.s32 1, %v213
  %v215 = vrot.slane %v206, %v214
  %v216 = vlaneseq
  %v217 = vshrl.u32 %v216, 7
  %v218 = vsub.s32 2, %v217
  %v219 = vrot.slane %v206, %v218
  %vm223 = vcmask 261120
  %v225 = vsel %vm223, %v193, 0
  %227 = vmatprep.subr.mxu0 %v195
  %228 = vmatpush1.msra.mxu0 %v194
  %229 = vmatprep.subr.mxu0 %v198
  %230 = vmatpush1.msra.mxu0 %v197
  %231 = vmatprep.subr.mxu0 %v201
  %232 = vmatpush1.msra.mxu0 %v200
  %233 = vmatprep.subr.mxu0 %v204
  %234 = vmatpush1.msra.mxu0 %v203
  %235 = vmatprep.subr.mxu0 0.0
  %236 = vmatpush1.msra.mxu0 0.0
  %237 = vmatprep.subr.mxu0 0.0
  %238 = vmatpush1.msra.mxu0 0.0
  %239 = vmatprep.subr.mxu0 0.0
  %240 = vmatpush1.msra.mxu0 0.0
  %241 = vmatprep.subr.mxu0 0.0
  %242 = vmatpush1.msra.mxu0 0.0
  %243 = vmatprep.subr.mxu0 0.0
  %244 = vmatpush1.msra.mxu0 0.0
  %245 = vmatprep.subr.mxu0 0.0
  %246 = vmatpush1.msra.mxu0 0.0
  %247 = vmatprep.subr.mxu0 0.0
  %248 = vmatpush1.msra.mxu0 0.0
  %249 = vmatprep.subr.mxu0 0.0
  %250 = vmatpush1.msra.mxu0 0.0
  %251 = vmatprep.subr.mxu0 0.0
  %252 = vmatpush1.msra.mxu0 0.0
  %253 = vmatprep.subr.mxu0 0.0
  %254 = vmatpush1.msra.mxu0 0.0
  %255 = vmatprep.subr.mxu0 0.0
  %256 = vmatpush1.msra.mxu0 0.0
  %257 = vmatprep.subr.mxu0 0.0
  %258 = vmatpush1.msra.mxu0 0.0
  %259 = vmatprep.subr.mxu0 0.0
  %260 = vmatpush1.msra.mxu0 0.0
  %261 = vmatprep.subr.mxu0 0.0
  %262 = vmatpush1.msra.mxu0 0.0
  %263 = vmatprep.subr.mxu0 0.0
  %264 = vmatpush1.msra.mxu0 0.0
  %265 = vmatprep.subr.mxu0 0.0
  %266 = vmatpush1.msra.mxu0 0.0
  %267 = vmatprep.subr.mxu0 0.0
  %268 = vmatpush1.msra.mxu0 0.0
  %269 = vmatprep.subr.mxu0 0.0
  %270 = vmatpush1.msra.mxu0 0.0
  %271 = vmatprep.subr.mxu0 0.0
  %272 = vmatpush1.msra.mxu0 0.0
  %273 = vmatprep.subr.mxu0 0.0
  %274 = vmatpush1.msra.mxu0 0.0
  %275 = vmatprep.subr.mxu0 0.0
  %276 = vmatpush1.msra.mxu0 0.0
  %277 = vmatprep.subr.mxu0 0.0
  %278 = vmatpush1.msra.mxu0 0.0
  %279 = vmatprep.subr.mxu0 0.0
  %280 = vmatpush1.msra.mxu0 0.0
  %281 = vmatprep.subr.mxu0 0.0
  %282 = vmatpush1.msra.mxu0 0.0
  %283 = vmatprep.subr.mxu0 0.0
  %284 = vmatpush1.msra.mxu0 0.0
  %285 = vmatprep.subr.mxu0 0.0
  %286 = vmatpush1.msra.mxu0 0.0
  %287 = vmatprep.subr.mxu0 0.0
  %288 = vmatpush1.msra.mxu0 0.0
  %289 = vmatprep.subr.mxu0 0.0
  %290 = vmatpush1.msra.mxu0 0.0
  %291 = vmatprep.mubr.f32.mxu0 0.0
  %292 = vmatmul.mubr.f32.gmra.mrb[0].mxu0 %v225
  %v293 = vpop.f32.mrb[0].mxu0
  %v294 = vadd.f32 %v211, %v293
  %v295 = vpop.f32.mrb[0].mxu0
  %v296 = vadd.f32 %v215, %v295
  %297 = vdwg.mxu0
  %298 = vmatprep.subr.mxu0 0.0
  %299 = vmatpush1.msra.mxu0 %v196
  %300 = vmatprep.subr.mxu0 0.0
  %301 = vmatpush1.msra.mxu0 %v199
  %302 = vmatprep.subr.mxu0 0.0
  %303 = vmatpush1.msra.mxu0 %v202
  %304 = vmatprep.subr.mxu0 0.0
  %305 = vmatpush1.msra.mxu0 %v205
  %306 = vmatprep.subr.mxu0 0.0
  %307 = vmatpush1.msra.mxu0 0.0
  %308 = vmatprep.subr.mxu0 0.0
  %309 = vmatpush1.msra.mxu0 0.0
  %310 = vmatprep.subr.mxu0 0.0
  %311 = vmatpush1.msra.mxu0 0.0
  %312 = vmatprep.subr.mxu0 0.0
  %313 = vmatpush1.msra.mxu0 0.0
  %314 = vmatprep.subr.mxu0 0.0
  %315 = vmatpush1.msra.mxu0 0.0
  %316 = vmatprep.subr.mxu0 0.0
  %317 = vmatpush1.msra.mxu0 0.0
  %318 = vmatprep.subr.mxu0 0.0
  %319 = vmatpush1.msra.mxu0 0.0
  %320 = vmatprep.subr.mxu0 0.0
  %321 = vmatpush1.msra.mxu0 0.0
  %322 = vmatprep.subr.mxu0 0.0
  %323 = vmatpush1.msra.mxu0 0.0
  %324 = vmatprep.subr.mxu0 0.0
  %325 = vmatpush1.msra.mxu0 0.0
  %326 = vmatprep.subr.mxu0 0.0
  %327 = vmatpush1.msra.mxu0 0.0
  %328 = vmatprep.subr.mxu0 0.0
  %329 = vmatpush1.msra.mxu0 0.0
  %330 = vmatprep.subr.mxu0 0.0
  %331 = vmatpush1.msra.mxu0 0.0
  %332 = vmatprep.subr.mxu0 0.0
  %333 = vmatpush1.msra.mxu0 0.0
  %334 = vmatprep.subr.mxu0 0.0
  %335 = vmatpush1.msra.mxu0 0.0
  %336 = vmatprep.subr.mxu0 0.0
  %337 = vmatpush1.msra.mxu0 0.0
  %338 = vmatprep.subr.mxu0 0.0
  %339 = vmatpush1.msra.mxu0 0.0
  %340 = vmatprep.subr.mxu0 0.0
  %341 = vmatpush1.msra.mxu0 0.0
  %342 = vmatprep.subr.mxu0 0.0
  %343 = vmatpush1.msra.mxu0 0.0
  %344 = vmatprep.subr.mxu0 0.0
  %345 = vmatpush1.msra.mxu0 0.0
  %346 = vmatprep.subr.mxu0 0.0
  %347 = vmatpush1.msra.mxu0 0.0
  %348 = vmatprep.subr.mxu0 0.0
  %349 = vmatpush1.msra.mxu0 0.0
  %350 = vmatprep.subr.mxu0 0.0
  %351 = vmatpush1.msra.mxu0 0.0
  %352 = vmatprep.subr.mxu0 0.0
  %353 = vmatpush1.msra.mxu0 0.0
  %354 = vmatprep.subr.mxu0 0.0
  %355 = vmatpush1.msra.mxu0 0.0
  %356 = vmatprep.subr.mxu0 0.0
  %357 = vmatpush1.msra.mxu0 0.0
  %358 = vmatprep.subr.mxu0 0.0
  %359 = vmatpush1.msra.mxu0 0.0
  %360 = vmatprep.subr.mxu0 0.0
  %361 = vmatpush1.msra.mxu0 0.0
  %362 = vmatprep.mubr.f32.mxu0 0.0
  %363 = vmatmul.mubr.f32.gmra.mrb[0].mxu0 %v225
  %v364 = vpop.f32.mrb[0].mxu0
  %v365 = vadd.f32 %v219, %v364
  %v366 = vpop.f32.mrb[0].mxu0
  %367 = vdwg.mxu0
  %368 = vst [vmem:[%s7] sm:$0xff] %v294
  %369 = vst [vmem:[%s7 + $0x8] sm:$0xff] %v296
  %v370 = vlaneseq
  %v371 = vand.u32 %v370, 127
  %vm372 = vcmp.lt.s32.totalorder %v371, 4
  %v373 = vsel %vm372, %v365, -1e+30
  %374 = vmax.xlane.f32.xlu0 %v373
  %v375 = vpop.xlane.xlu0 %374
  %v376 = vsub.f32 %v373, %v375
  %v377 = vmul.f32 %v376, 1.442695
  %v378 = vpow.pop %v377
  %v379 = vsel %vm372, %v378, 0.0
  %380 = vadd.xlane.f32.xlu0 %v379
  %v381 = vpop.xlane.xlu0 %380
  %v382 = vrcp.pop %v381
  %v383 = vmul.f32 %v379, %v382
  %384 = vst [vmem:[%s7 + $0x10] sm:$0xff] %v383
  // Predicated region
  $region30: #{gmvae_forward.2} parent=0 // pred_check
    _
  $region31: #{gmvae_forward.2} parent=0 // pred_check_branch
    %386 = sbr.rel (0) target = $region33
  $region32: #{gmvae_forward.2} parent=0 // pred_region
    _
  $region33: #{gmvae_forward.2} parent=0 // pred_fallthru
    _
  // Predicated region
  $region34: #{gmvae_forward.2} parent=0 // pred_check
    _
  $region35: #{gmvae_forward.2} parent=0 // pred_check_branch
    %388 = sbr.rel (0) target = $region37
  $region36: #{gmvae_forward.2} parent=0 // pred_region
    _
  $region37: #{gmvae_forward.2} parent=0 // pred_fallthru
    _

</llo_original>
